<compile_context>
chip_gen: v7x
topology: tpu7x:2x2x1
jax: 0.10.0
libtpu: 0.0.40
codegen_flags: <defaults>
</compile_context>

<pallas_src>
import functools
import math

import jax
import jax.numpy as jnp
from jax.experimental import pallas as pl
from jax.experimental.pallas import tpu as pltpu


def _cdiv(a: int, b: int) -> int:
    return (a + b - 1) // b


def _round_up(x: int, m: int) -> int:
    return (x + m - 1) // m * m


def _dice_partial_kernel(x_ref, y_ref, inter_ref, sets_ref, *,
                         kb, kbs, tk, reduce_len):
    """Accumulate per-row partial sums for one (split, row-block) output tile.

    x_ref / y_ref : (TR, TK) tile of the (rows, reduce_len) slab
    inter_ref     : (1, TR, 1) f32 resident output block, sum(x*y) over this split's k range
    sets_ref      : (1, TR, 1) f32 resident output block, sum(x+y) over this split's k range
    """
    c = pl.program_id(0)          # reduction-split index (v7x megacore axis)
    k = pl.program_id(2)          # k step inside this split
    gk = c * kbs + k              # global reduction-block index

    @pl.when(k == 0)
    def _init():
        inter_ref[...] = jnp.zeros_like(inter_ref)
        sets_ref[...] = jnp.zeros_like(sets_ref)

    # Skip the (at most one) phantom step when kb is odd and split 1 runs one
    # step past the end of the reduction range (its index_map is clamped).
    @pl.when(gk < kb)
    def _accumulate():
        x = x_ref[...].astype(jnp.float32)
        y = y_ref[...].astype(jnp.float32)
        if reduce_len % tk != 0:
            # Ragged last reduction tile: the DMA only fills the in-bounds
            # lanes; zero everything past reduce_len so undefined VMEM
            # contents never enter the sums.
            col = jax.lax.broadcasted_iota(jnp.int32, x.shape, dimension=1)
            valid = reduce_len - gk * tk
            keep = col < valid
            x = jnp.where(keep, x, 0.0)
            y = jnp.where(keep, y, 0.0)
        inter_ref[0] += jnp.sum(x * y, axis=-1, keepdims=True)
        sets_ref[0] += jnp.sum(x + y, axis=-1, keepdims=True)


# ~4 MiB of input data per block -> 2 inputs x 2 pipeline buffers = 16 MiB,
# comfortably inside every generation's VMEM while amortising the ~0.35 us
# per-grid-step pipeline overhead.
_BYTES_PER_INPUT_BLOCK = 4 * 1024 * 1024
_TR_CAP = 256           # multiple of 32 -> valid for f32/bf16/int8 packing
_MIN_SPLIT_REDUCE = 2048  # don't force a 2-way reduction split on tiny inputs


def dice_loss(inp, target, epsilon: float = 1e-9, reduce_batch_first: bool = False):
    """Pallas TPU implementation of DiceLoss.forward."""
    assert inp.shape == target.shape, "input/target shapes must match"
    ndim = inp.ndim
    # sum_dim = (-1,-2) if dim==2 or not reduce_batch_first else (-1,-2,-3)
    n_sum = 2 if (ndim == 2 or not reduce_batch_first) else 3
    lead_shape = inp.shape[: ndim - n_sum]
    reduce_len = int(math.prod(inp.shape[ndim - n_sum:]))
    rows = int(math.prod(lead_shape)) if lead_shape else 1

    # Keep the original dtype (bf16 halves HBM traffic); the kernel upcasts
    # per-tile to f32 for accumulation.
    x2d = jnp.reshape(inp, (rows, reduce_len))
    y2d = jnp.reshape(target, (rows, reduce_len))

    # ---- tile sizing ------------------------------------------------------
    itemsize = int(jnp.dtype(inp.dtype).itemsize)
    sub = max(8, 32 // max(itemsize, 1))          # 8 f32 / 16 bf16 / 32 int8
    elem_budget = max(128, _BYTES_PER_INPUT_BLOCK // max(itemsize, 1))

    tr = min(_round_up(rows, sub), _TR_CAP)
    tk = min(_round_up(reduce_len, 128),
             max(128, (elem_budget // tr) // 128 * 128))

    row_blocks = _cdiv(rows, tr)
    kb = _cdiv(reduce_len, tk)

    # v7x megacore: if everything fits in a single block but the reduction is
    # sizeable, split the reduction so both TensorCores get work.
    if row_blocks == 1 and kb == 1 and reduce_len >= _MIN_SPLIT_REDUCE:
        tk = _round_up(_cdiv(reduce_len, 2), 128)
        kb = _cdiv(reduce_len, tk)

    n_split = 2 if kb >= 2 else 1
    kbs = _cdiv(kb, n_split)
    grid = (n_split, row_blocks, kbs)

    def in_index(c, r, k):
        # Clamp so the (at most one) phantom step of an odd split re-reads a
        # valid block; the kernel's pl.when(gk < kb) ignores its contribution.
        return (r, jnp.minimum(c * kbs + k, kb - 1))

    def out_index(c, r, k):
        # Constant along the reduction axis -> resident f32 accumulator block.
        return (c, r, 0)

    kernel = functools.partial(_dice_partial_kernel, kb=kb, kbs=kbs, tk=tk,
                               reduce_len=reduce_len)

    inter_p, sets_p = pl.pallas_call(
        kernel,
        out_shape=(
            jax.ShapeDtypeStruct((n_split, rows, 1), jnp.float32),
            jax.ShapeDtypeStruct((n_split, rows, 1), jnp.float32),
        ),
        grid_spec=pltpu.PrefetchScalarGridSpec(
            num_scalar_prefetch=0,
            grid=grid,
            in_specs=[
                pl.BlockSpec((tr, tk), in_index),
                pl.BlockSpec((tr, tk), in_index),
            ],
            out_specs=[
                pl.BlockSpec((1, tr, 1), out_index),
                pl.BlockSpec((1, tr, 1), out_index),
            ],
        ),
        compiler_params=pltpu.CompilerParams(
            # split axis + rows axis shard across TensorCores (v7x megacore);
            # the reduction axis carries the accumulators -> "arbitrary".
            dimension_semantics=("parallel", "parallel", "arbitrary"),
            vmem_limit_bytes=40 * 1024 * 1024,
        ),
    )(x2d, y2d)

    # Tiny epilogue (O(rows)) in plain JAX: combine the per-split partials.
    inter = jnp.sum(inter_p[..., 0], axis=0)          # (rows,)
    sets = jnp.sum(sets_p[..., 0], axis=0)            # (rows,)
    intersection = 2.0 * inter
    setssum = jnp.where(sets == 0.0, intersection, sets)
    dice = intersection / (setssum + epsilon)
    return 1.0 - jnp.mean(dice)


def _dice_loss_ref(inp, target, epsilon=1e-9, reduce_batch_first=False):
    """Plain-JAX reference mirroring the PyTorch module (for sanity check)."""
    ndim = inp.ndim
    sum_dim = (-1, -2) if (ndim == 2 or not reduce_batch_first) else (-1, -2, -3)
    x = inp.astype(jnp.float32)
    y = target.astype(jnp.float32)
    intersection = 2.0 * jnp.sum(x * y, axis=sum_dim)
    setssum = jnp.sum(x + y, axis=sum_dim)
    setssum = jnp.where(setssum == 0, intersection, setssum)
    dice = intersection / (setssum + epsilon)
    return 1.0 - jnp.mean(dice)


if __name__ == "__main__":
    key = jax.random.PRNGKey(0)
    k1, k2, k3, k4, k5, k6 = jax.random.split(key, 6)

    # Small NCHW segmentation-style inputs.
    N, C, H, W = 2, 4, 16, 16
    x = jax.random.uniform(k1, (N, C, H, W), dtype=jnp.float32)            # soft predictions
    t = (jax.random.uniform(k2, (N, C, H, W)) > 0.5).astype(jnp.float32)   # binary targets

    # Case 1: default reduce_batch_first=False (sum over H, W).
    loss = jax.block_until_ready(dice_loss(x, t))
    ref = _dice_loss_ref(x, t)
    assert jnp.allclose(loss, ref, atol=1e-5, rtol=1e-5), (loss, ref)

    # Case 2: reduce_batch_first=True (sum over C, H, W).
    loss_b = jax.block_until_ready(dice_loss(x, t, reduce_batch_first=True))
    ref_b = _dice_loss_ref(x, t, reduce_batch_first=True)
    assert jnp.allclose(loss_b, ref_b, atol=1e-5, rtol=1e-5), (loss_b, ref_b)

    # Case 3: non-(8,128)-aligned shape exercises the ragged-tile mask path.
    x_odd = jax.random.uniform(k3, (2, 3, 10, 10), dtype=jnp.float32)
    t_odd = (jax.random.uniform(k4, (2, 3, 10, 10)) > 0.5).astype(jnp.float32)
    loss_o = jax.block_until_ready(dice_loss(x_odd, t_odd))
    ref_o = _dice_loss_ref(x_odd, t_odd)
    assert jnp.allclose(loss_o, ref_o, atol=1e-5, rtol=1e-5), (loss_o, ref_o)

    # Case 4: larger spatial dims exercise the 2-way reduction split
    # (megacore leading grid axis) + JAX-side partial-sum combine.
    x_big = jax.random.uniform(k5, (2, 4, 64, 64), dtype=jnp.float32)
    t_big = (jax.random.uniform(k6, (2, 4, 64, 64)) > 0.5).astype(jnp.float32)
    loss_big = jax.block_until_ready(dice_loss(x_big, t_big))
    ref_big = _dice_loss_ref(x_big, t_big)
    assert jnp.allclose(loss_big, ref_big, atol=1e-5, rtol=1e-5), (loss_big, ref_big)

    # Case 5: bf16 inputs exercise the 16-row sublane-aligned tile path.
    x_bf = x.astype(jnp.bfloat16)
    t_bf = t.astype(jnp.bfloat16)
    loss_bf = jax.block_until_ready(dice_loss(x_bf, t_bf))
    ref_bf = _dice_loss_ref(x_bf, t_bf)
    assert jnp.allclose(loss_bf, ref_bf, atol=1e-3, rtol=1e-3), (loss_bf, ref_bf)

    print("KERNEL_OK")
</pallas_src>

<mosaic_0001>
module attributes {stable_mosaic.version = 11 : i64} {
  func.func @_dice_partial_kernel(%arg0: i32, %arg1: i32, %arg2: i32, %arg3: memref<8x256xf32, #tpu.memory_space<vmem>>, %arg4: memref<8x256xf32, #tpu.memory_space<vmem>>, %arg5: memref<1x8x1xf32, #tpu.memory_space<vmem>>, %arg6: memref<1x8x1xf32, #tpu.memory_space<vmem>>) attributes {dimension_semantics = [#tpu.dimension_semantics<parallel>, #tpu.dimension_semantics<parallel>, #tpu.dimension_semantics<arbitrary>], iteration_bounds = array<i64: 1, 1, 1>, scalar_prefetch = 0 : i64, scratch_operands = 0 : i64, tpu.core_type = #tpu.core_type<tc>, window_params = [{transform_indices = @transform_0, window_bounds = array<i64: 8, 256>}, {transform_indices = @transform_1, window_bounds = array<i64: 8, 256>}, {transform_indices = @transform_2, window_bounds = array<i64: 1, 8, 1>}, {transform_indices = @transform_3, window_bounds = array<i64: 1, 8, 1>}]} {
    %c1_i32 = arith.constant 1 : i32
    %0 = arith.muli %arg0, %c1_i32 : i32
    %1 = arith.addi %0, %arg2 : i32
    %c0_i32 = arith.constant 0 : i32
    %2 = arith.cmpi eq, %arg2, %c0_i32 : i32
    %3 = arith.extui %2 : i1 to i32
    %c0_i32_0 = arith.constant 0 : i32
    %4 = arith.cmpi ne, %3, %c0_i32_0 : i32
    scf.if %4 {
      %cst = arith.constant 0.000000e+00 : f32
      %8 = vector.broadcast %cst : f32 to vector<1x8x1xf32>
      %c0 = arith.constant 0 : index
      %c0_3 = arith.constant 0 : index
      %c0_4 = arith.constant 0 : index
      %9 = vector.load %arg5[%c0, %c0_3, %c0_4] : memref<1x8x1xf32, #tpu.memory_space<vmem>>, vector<1x8x1xf32>
      tpu.vector_store %arg5[%c0, %c0_3, %c0_4], %8 {strides = array<i32>} : memref<1x8x1xf32, #tpu.memory_space<vmem>>, vector<1x8x1xf32>,
      %cst_5 = arith.constant 0.000000e+00 : f32
      %10 = vector.broadcast %cst_5 : f32 to vector<1x8x1xf32>
      %c0_6 = arith.constant 0 : index
      %c0_7 = arith.constant 0 : index
      %c0_8 = arith.constant 0 : index
      %11 = vector.load %arg6[%c0_6, %c0_7, %c0_8] : memref<1x8x1xf32, #tpu.memory_space<vmem>>, vector<1x8x1xf32>
      tpu.vector_store %arg6[%c0_6, %c0_7, %c0_8], %10 {strides = array<i32>} : memref<1x8x1xf32, #tpu.memory_space<vmem>>, vector<1x8x1xf32>,
    } else {
    }
    %c1_i32_1 = arith.constant 1 : i32
    %5 = arith.cmpi slt, %1, %c1_i32_1 : i32
    %6 = arith.extui %5 : i1 to i32
    %c0_i32_2 = arith.constant 0 : i32
    %7 = arith.cmpi ne, %6, %c0_i32_2 : i32
    scf.if %7 {
      %c0 = arith.constant 0 : index
      %c0_3 = arith.constant 0 : index
      %8 = vector.load %arg3[%c0, %c0_3] : memref<8x256xf32, #tpu.memory_space<vmem>>, vector<8x256xf32>
      %c0_4 = arith.constant 0 : index
      %c0_5 = arith.constant 0 : index
      %9 = vector.load %arg4[%c0_4, %c0_5] : memref<8x256xf32, #tpu.memory_space<vmem>>, vector<8x256xf32>
      %c0_6 = arith.constant 0 : index
      %c0_7 = arith.constant 0 : index
      %c0_8 = arith.constant 0 : index
      %10 = vector.load %arg5[%c0_6, %c0_7, %c0_8] : memref<1x8x1xf32, #tpu.memory_space<vmem>>, vector<1x8x1xf32>
      %11 = vector.shape_cast %10 : vector<1x8x1xf32> to vector<8x1xf32>
      %12 = arith.mulf %8, %9 : vector<8x256xf32>
      %cst = arith.constant dense<0.000000e+00> : vector<8xf32>
      %13 = vector.multi_reduction <add>, %12, %cst [1] : vector<8x256xf32> to vector<8xf32>
      %14 = vector.shape_cast %13 : vector<8xf32> to vector<8x1xf32>
      %15 = arith.addf %11, %14 : vector<8x1xf32>
      %c0_9 = arith.constant 0 : index
      %c0_10 = arith.constant 0 : index
      %c0_11 = arith.constant 0 : index
      %16 = vector.load %arg5[%c0_9, %c0_10, %c0_11] : memref<1x8x1xf32, #tpu.memory_space<vmem>>, vector<1x8x1xf32>
      %17 = vector.shape_cast %16 : vector<1x8x1xf32> to vector<8x1xf32>
      %18 = vector.shape_cast %15 : vector<8x1xf32> to vector<1x8x1xf32>
      tpu.vector_store %arg5[%c0_9, %c0_10, %c0_11], %18 {strides = array<i32>} : memref<1x8x1xf32, #tpu.memory_space<vmem>>, vector<1x8x1xf32>,
      %c0_12 = arith.constant 0 : index
      %c0_13 = arith.constant 0 : index
      %c0_14 = arith.constant 0 : index
      %19 = vector.load %arg6[%c0_12, %c0_13, %c0_14] : memref<1x8x1xf32, #tpu.memory_space<vmem>>, vector<1x8x1xf32>
      %20 = vector.shape_cast %19 : vector<1x8x1xf32> to vector<8x1xf32>
      %21 = arith.addf %8, %9 : vector<8x256xf32>
      %cst_15 = arith.constant dense<0.000000e+00> : vector<8xf32>
      %22 = vector.multi_reduction <add>, %21, %cst_15 [1] : vector<8x256xf32> to vector<8xf32>
      %23 = vector.shape_cast %22 : vector<8xf32> to vector<8x1xf32>
      %24 = arith.addf %20, %23 : vector<8x1xf32>
      %c0_16 = arith.constant 0 : index
      %c0_17 = arith.constant 0 : index
      %c0_18 = arith.constant 0 : index
      %25 = vector.load %arg6[%c0_16, %c0_17, %c0_18] : memref<1x8x1xf32, #tpu.memory_space<vmem>>, vector<1x8x1xf32>
      %26 = vector.shape_cast %25 : vector<1x8x1xf32> to vector<8x1xf32>
      %27 = vector.shape_cast %24 : vector<8x1xf32> to vector<1x8x1xf32>
      tpu.vector_store %arg6[%c0_16, %c0_17, %c0_18], %27 {strides = array<i32>} : memref<1x8x1xf32, #tpu.memory_space<vmem>>, vector<1x8x1xf32>,
    } else {
    }
    return
  }
  func.func @transform_0(%arg0: i32, %arg1: i32, %arg2: i32) -> (i32, i32) {
    %c1_i32 = arith.constant 1 : i32
    %0 = arith.muli %arg0, %c1_i32 : i32
    %1 = arith.addi %0, %arg2 : i32
    %c0_i32 = arith.constant 0 : i32
    %2 = arith.minsi %1, %c0_i32 : i32
    %c0_i32_0 = arith.constant 0 : i32
    return %arg1, %2 : i32, i32
  }
  func.func @transform_1(%arg0: i32, %arg1: i32, %arg2: i32) -> (i32, i32) {
    %c1_i32 = arith.constant 1 : i32
    %0 = arith.muli %arg0, %c1_i32 : i32
    %1 = arith.addi %0, %arg2 : i32
    %c0_i32 = arith.constant 0 : i32
    %2 = arith.minsi %1, %c0_i32 : i32
    %c0_i32_0 = arith.constant 0 : i32
    return %arg1, %2 : i32, i32
  }
  func.func @transform_2(%arg0: i32, %arg1: i32, %arg2: i32) -> (i32, i32, i32) {
    %c0_i32 = arith.constant 0 : i32
    %c0_i32_0 = arith.constant 0 : i32
    return %arg0, %arg1, %c0_i32 : i32, i32, i32
  }
  func.func @transform_3(%arg0: i32, %arg1: i32, %arg2: i32) -> (i32, i32, i32) {
    %c0_i32 = arith.constant 0 : i32
    %c0_i32_0 = arith.constant 0 : i32
    return %arg0, %arg1, %c0_i32 : i32, i32, i32
  }
}

</mosaic_0001>

<llo_original>
// kernel: tpu_custom_call.1
$region0: #{tpu_custom_call.1}
  #allocation0 [shape = 'u32[]', space=smem, size = 0x4, offset = 0x4, fixed_abs, tag = 'smem constant byte address 0x4 - core index']
  #allocation1 [shape = 'u32[144,128]{1,0:T(1,128)}', space=vmem, size = 0x12000, scoped, tag = 'internal scratch']
  %s0 = inlined_call_operand.hbm [shape: f32[8,256], index: 0, kind: input, shape index: {}]
  %s1 = inlined_call_operand.hbm [shape: f32[8,256], index: 1, kind: input, shape index: {}]
  %s2 = inlined_call_operand.vmem [shape: f32[1,8,1], index: 2, kind: output, shape index: {0}]
  %s3 = inlined_call_operand.vmem [shape: f32[1,8,1], index: 3, kind: output, shape index: {1}]
  %4 = xla_tuple %s2, %s3
  %s5 = sld [smem:[#allocation0]]
  $region42: #{tpu_custom_call.1} parent=0
    _
  %s7 = ssub.s32 1, %s5
  %s8 = scalar_select 0, %s7, %s5
  $region1: #{tpu_custom_call.1} parent=0
    #allocation2 [shape = 'u8[8192]{0}', space=vmem, size = 0x2000, scoped, tag = 'input window, operand 0, single buffered']
    #allocation3 [shape = 's32[1]{0}', space=sflag, size = 0x4, scoped, tag = 'scoped memory for tpu_custom_call.1']
    #allocation4 [shape = 'u8[8192]{0}', space=vmem, size = 0x2000, scoped, tag = 'input window, operand 1, single buffered']
    #allocation5 [shape = 's32[1]{0}', space=sflag, size = 0x4, scoped, tag = 'scoped memory for tpu_custom_call.1']
    %9 = vsyncpa [#allocation3], 0
    %10 = vsyncpa [#allocation5], 0
    // Predicated region
    $region2: #{tpu_custom_call.1} parent=1 // pred_check
      _
    $region3: #{tpu_custom_call.1} parent=1 // pred_check_branch
      %12 = sbr.rel (0) target = $region5
    $region4: #{tpu_custom_call.1} parent=1 // pred_region
      %s13 = sadd.s32 0, 0
      %p14 = scmp.lt.s32.totalorder %s13, 0
      %s15 = scalar_select %p14, %s13, 0
      %s16 = smul.u32 2, %s15
      %s18 = ssub.s32 256, 256
      %19 = vsyncadd [#allocation3], %s18
      %s20 = smul.addr %s16, 128
      %s21 = scalar_lea.hbm %s0, %s20
      %s23 = sshll.u32 [#allocation2], 4
      %s24 = int_to_ptr.vmem [resolvable:$true] %s23
      %26 = dma.hbm_to_vmem [thread:$0]  %s21, 256, %s24, [#allocation3]
    $region5: #{tpu_custom_call.1} parent=1 // pred_fallthru
      _
    // Predicated region
    $region6: #{tpu_custom_call.1} parent=1 // pred_check
      _
    $region7: #{tpu_custom_call.1} parent=1 // pred_check_branch
      %28 = sbr.rel (0) target = $region9
    $region8: #{tpu_custom_call.1} parent=1 // pred_region
      %s29 = sadd.s32 0, 0
      %p30 = scmp.lt.s32.totalorder %s29, 0
      %s31 = scalar_select %p30, %s29, 0
      %s32 = smul.u32 2, %s31
      %s34 = ssub.s32 256, 256
      %35 = vsyncadd [#allocation5], %s34
      %s36 = smul.addr %s32, 128
      %s37 = scalar_lea.hbm %s1, %s36
      %s39 = sshll.u32 [#allocation4], 4
      %s40 = int_to_ptr.vmem [resolvable:$true] %s39
      %42 = dma.hbm_to_vmem [thread:$0]  %s37, 256, %s40, [#allocation5]
    $region9: #{tpu_custom_call.1} parent=1 // pred_fallthru
      _
    // Predicated region
    $region10: #{tpu_custom_call.1} parent=1 // pred_check
      _
    $region11: #{tpu_custom_call.1} parent=1 // pred_check_branch
      %44 = sbr.rel (0) target = $region13
    $region12: #{tpu_custom_call.1} parent=1 // pred_region
      %45 = dma.done [#allocation3], 256
    $region13: #{tpu_custom_call.1} parent=1 // pred_fallthru
      _
    // Predicated region
    $region14: #{tpu_custom_call.1} parent=1 // pred_check
      _
    $region15: #{tpu_custom_call.1} parent=1 // pred_check_branch
      %47 = sbr.rel (0) target = $region17
    $region16: #{tpu_custom_call.1} parent=1 // pred_region
      %48 = dma.done [#allocation5], 256
    $region17: #{tpu_custom_call.1} parent=1 // pred_fallthru
      _
    %s49 = sadd.s32 0, 0
    %p50 = scmp.lt.s32.totalorder %s49, 0
    %s51 = scalar_select %p50, %s49, 0
    %s52 = smul.u32 2, %s51
    %s53 = sadd.s32 0, 0
    %p54 = scmp.lt.s32.totalorder %s53, 0
    %s55 = scalar_select %p54, %s53, 0
    %s56 = smul.u32 2, %s55
    %s57 = sadd.s32 0, 0
    %p58 = scmp.eq.s32.totalorder 0, 0
    // Predicated region
    $region18: #{tpu_custom_call.1} parent=1 // pred_check
      %p59 = pneg %p58
    $region19: #{tpu_custom_call.1} parent=1 // pred_check_branch
      %61 = sbr.rel (%p59) target = $region21
    $region20: #{tpu_custom_call.1} parent=1 // pred_region
      %vm62 = vcmask 7168
      %63 = vst.msk [vmem:[%s2] sm:$0xff] %vm62, 0.0
      %64 = vst.msk [vmem:[%s3] sm:$0xff] %vm62, 0.0
    $region21: #{tpu_custom_call.1} parent=1 // pred_fallthru
      _
    %p65 = scmp.lt.s32.totalorder %s57, 1
    // Predicated region
    $region22: #{tpu_custom_call.1} parent=1 // pred_check
      %p66 = pneg %p65
    $region23: #{tpu_custom_call.1} parent=1 // pred_check_branch
      %68 = sbr.rel (%p66) target = $region25
    $region24: #{tpu_custom_call.1} parent=1 // pred_region
      %v69 = vld [vmem:[#allocation2] sm:$0xff]
      %v70 = vld [vmem:[#allocation2 + $0x8] sm:$0xff]
      %v71 = vld [vmem:[#allocation4] sm:$0xff]
      %v72 = vld [vmem:[#allocation4 + $0x8] sm:$0xff]
      %v73 = vld [vmem:[%s2] sm:$0xff]
      %v74 = vmul.f32 %v69, %v71
      %v75 = vmul.f32 %v70, %v72
      %v76 = vadd.f32 %v74, %v75
      %77 = vadd.xlane.f32.xlu0 %v76
      %v78 = vpop.xlane.xlu0 %77
      %v79 = vadd.f32 %v73, %v78
      %vm80 = vcmask 7168
      %81 = vst.msk [vmem:[%s2] sm:$0xff] %vm80, %v79
      %v82 = vld [vmem:[%s3] sm:$0xff]
      %v83 = vadd.f32 %v69, %v71
      %v84 = vadd.f32 %v70, %v72
      %v85 = vadd.f32 %v83, %v84
      %86 = vadd.xlane.f32.xlu0 %v85
      %v87 = vpop.xlane.xlu0 %86
      %v88 = vadd.f32 %v82, %v87
      %89 = vst.msk [vmem:[%s3] sm:$0xff] %vm80, %v88
    $region25: #{tpu_custom_call.1} parent=1 // pred_fallthru
      _
    // Predicated region
    $region26: #{tpu_custom_call.1} parent=1 // pred_check
      _
    $region27: #{tpu_custom_call.1} parent=1 // pred_check_branch
      %91 = sbr.rel (0) target = $region29
    $region28: #{tpu_custom_call.1} parent=1 // pred_region
      _
    $region29: #{tpu_custom_call.1} parent=1 // pred_fallthru
      _
    // Predicated region
    $region30: #{tpu_custom_call.1} parent=1 // pred_check
      _
    $region31: #{tpu_custom_call.1} parent=1 // pred_check_branch
      %93 = sbr.rel (0) target = $region33
    $region32: #{tpu_custom_call.1} parent=1 // pred_region
      _
    $region33: #{tpu_custom_call.1} parent=1 // pred_fallthru
      _
    // Predicated region
    $region34: #{tpu_custom_call.1} parent=1 // pred_check
      _
    $region35: #{tpu_custom_call.1} parent=1 // pred_check_branch
      %95 = sbr.rel (0) target = $region37
    $region36: #{tpu_custom_call.1} parent=1 // pred_region
      _
    $region37: #{tpu_custom_call.1} parent=1 // pred_fallthru
      _
    // Predicated region
    $region38: #{tpu_custom_call.1} parent=1 // pred_check
      _
    $region39: #{tpu_custom_call.1} parent=1 // pred_check_branch
      %97 = sbr.rel (0) target = $region41
    $region40: #{tpu_custom_call.1} parent=1 // pred_region
      _
    $region41: #{tpu_custom_call.1} parent=1 // pred_fallthru
      _
    %98 = vsyncpa [#allocation3], 1
    %99 = vsyncpa [#allocation5], 1

</llo_original>
